<compile_context>
chip_gen: v7x
topology: tpu7x:2x2x1
jax: 0.10.0
libtpu: 0.0.40
codegen_flags: <defaults>
</compile_context>

<pallas_src>
from functools import partial

import jax
import jax.numpy as jnp
from jax.experimental import pallas as pl
from jax.experimental.pallas import tpu as pltpu

# ---- packed-parameter layout (rows of a (400, 64) f32 slab) ----------------
K_IN = 130                 # fc0 input features (unpadded)
K_W0 = 136                 # w0 row region padded 130 -> 136 (multiple of 8)
H = 64                     # hidden width
OUT = 8                    # fc4 output width
ROW_W0 = 0                 # rows [0, 136)   : fc0 weight (130 real rows)
ROW_W1 = ROW_W0 + K_W0     # rows [136, 200) : fc1 weight
ROW_W2 = ROW_W1 + H        # rows [200, 264) : fc2 weight
ROW_W3 = ROW_W2 + H        # rows [264, 328) : fc3 weight
ROW_W4 = ROW_W3 + H        # rows [328, 392) : fc4 weight (cols 8:64 zero)
ROW_B = ROW_W4 + H         # rows [392, 400) : b0..b4 (one row each), rest zero
PACK_ROWS = ROW_B + 8      # 400, multiple of 8 sublanes


def _round_up(n, m):
    return ((n + m - 1) // m) * m


def mlp_kernel(x_ref, p_ref, o5_ref, o4_ref, *, mxu_dtype):
    x = x_ref[...]                               # (TB, 130) f32

    def mm(a, w):
        # MXU matmul; operands optionally bf16, accumulation always f32.
        return jnp.dot(a.astype(mxu_dtype), w.astype(mxu_dtype),
                       preferred_element_type=jnp.float32)

    w0 = p_ref[ROW_W0:ROW_W0 + K_IN, :]          # (130, 64)
    w1 = p_ref[ROW_W1:ROW_W2, :]                 # (64, 64)
    w2 = p_ref[ROW_W2:ROW_W3, :]                 # (64, 64)
    w3 = p_ref[ROW_W3:ROW_W4, :]                 # (64, 64)
    w4 = p_ref[ROW_W4:ROW_B, :]                  # (64, 64) (cols 8:64 zero)
    biases = p_ref[ROW_B:PACK_ROWS, :]           # (8, 64): b0..b4 + zero rows
    b0 = biases[0:1, :]
    b1 = biases[1:2, :]
    b2 = biases[2:3, :]
    b3 = biases[3:4, :]
    b4 = biases[4:5, :]                          # (1, 64), cols 8:64 zero

    x1 = mm(x, w0) + b0                          # fc0
    x2 = jnp.maximum(mm(x1, w1) + b1, 0.0)       # fc1 + ReLU
    x3 = jnp.maximum(mm(x2, w2) + b2, 0.0)       # fc2 + ReLU
    x4 = jnp.maximum(mm(x3, w3) + b3, 0.0)       # fc3 + ReLU
    x5 = mm(x4, w4) + b4                         # fc4 (cols 8:64 exactly zero)

    o4_ref[...] = x4.astype(o4_ref.dtype)
    o5_ref[...] = x5[:, 0:OUT].astype(o5_ref.dtype)


def pack_params(params):
    """Pack all weights/biases into one (400, 64) f32 slab.  Call ONCE at init."""
    w0, b0, w1, b1, w2, b2, w3, b3, w4, b4 = params
    pack = jnp.zeros((PACK_ROWS, H), jnp.float32)
    pack = pack.at[ROW_W0:ROW_W0 + K_IN, :].set(w0)          # (130, 64)
    pack = pack.at[ROW_W1:ROW_W2, :].set(w1)
    pack = pack.at[ROW_W2:ROW_W3, :].set(w2)
    pack = pack.at[ROW_W3:ROW_W4, :].set(w3)
    pack = pack.at[ROW_W4:ROW_B, 0:OUT].set(w4)              # (64, 8)
    pack = pack.at[ROW_B + 0, :].set(b0[0])
    pack = pack.at[ROW_B + 1, :].set(b1[0])
    pack = pack.at[ROW_B + 2, :].set(b2[0])
    pack = pack.at[ROW_B + 3, :].set(b3[0])
    pack = pack.at[ROW_B + 4, 0:OUT].set(b4[0])              # (8,)
    return pack


@partial(jax.jit, static_argnames=("batch_tile", "mxu", "small_batch_threshold"))
def rnn_arch_2_final(x, packed, hc=None, *, batch_tile=2048, mxu="bf16",
                     small_batch_threshold=0):
    """Forward pass. Returns (x5, x4) like the PyTorch module. `hc` is unused.

    `packed` is the (400, 64) slab from pack_params() (pack once at init).
    mxu="bf16" (default) casts MXU operands to bf16 (accumulate in f32);
    mxu="f32" keeps the exact float32 path.
    """
    B, K = x.shape
    assert K == K_IN

    # Tiny batches: launch overhead dominates — plain fused jnp is faster.
    if B <= small_batch_threshold:
        w0 = packed[ROW_W0:ROW_W0 + K_IN, :]
        w1 = packed[ROW_W1:ROW_W2, :]
        w2 = packed[ROW_W2:ROW_W3, :]
        w3 = packed[ROW_W3:ROW_W4, :]
        w4 = packed[ROW_W4:ROW_B, 0:OUT]
        b0 = packed[ROW_B + 0]
        b1 = packed[ROW_B + 1]
        b2 = packed[ROW_B + 2]
        b3 = packed[ROW_B + 3]
        b4 = packed[ROW_B + 4, 0:OUT]
        x1 = x @ w0 + b0
        x2 = jnp.maximum(x1 @ w1 + b1, 0.0)
        x3 = jnp.maximum(x2 @ w2 + b2, 0.0)
        x4 = jnp.maximum(x3 @ w3 + b3, 0.0)
        return x4 @ w4 + b4, x4

    # --- batch tiling: amortize per-step overhead, minimize padding, and
    # guarantee >= 2 grid steps (both v7x TensorCores busy) when B >= 16.
    n_tiles = pl.cdiv(B, batch_tile)
    if B >= 16:
        n_tiles = max(n_tiles, 2)
    TB = _round_up(pl.cdiv(B, n_tiles), 8)
    Bp = TB * n_tiles

    xp = x if Bp == B else jnp.pad(x, ((0, Bp - B), (0, 0)))

    mxu_dtype = jnp.bfloat16 if mxu == "bf16" else jnp.float32
    kernel = partial(mlp_kernel, mxu_dtype=mxu_dtype)

    flops = 2 * Bp * (K_IN * H + 3 * H * H + H * OUT)
    bytes_accessed = 4 * (Bp * K_IN + PACK_ROWS * H + Bp * (H + OUT))

    x5p, x4p = pl.pallas_call(
        kernel,
        out_shape=(
            jax.ShapeDtypeStruct((Bp, OUT), jnp.float32),
            jax.ShapeDtypeStruct((Bp, H), jnp.float32),
        ),
        grid=(n_tiles,),
        in_specs=[
            # last dim == full array dim (130) -> legal block, no K padding
            pl.BlockSpec((TB, K_IN), lambda i: (i, 0)),
            # constant block index -> packed params stay VMEM-resident
            pl.BlockSpec((PACK_ROWS, H), lambda i: (0, 0)),
        ],
        out_specs=(
            pl.BlockSpec((TB, OUT), lambda i: (i, 0)),
            pl.BlockSpec((TB, H), lambda i: (i, 0)),
        ),
        compiler_params=pltpu.CompilerParams(
            dimension_semantics=("parallel",),
            vmem_limit_bytes=32 * 1024 * 1024),
        cost_estimate=pl.CostEstimate(
            flops=flops, transcendentals=0, bytes_accessed=bytes_accessed),
    )(xp, packed)

    if Bp != B:
        x5p = x5p[:B]
        x4p = x4p[:B]
    return x5p, x4p


def init_params(key):
    """Deterministic parameter init (PyTorch Linear-style uniform bounds)."""
    dims = [(130, 64), (64, 64), (64, 64), (64, 64), (64, 8)]
    params = []
    for (fan_in, fan_out) in dims:
        key, kw, kb = jax.random.split(key, 3)
        bound = 1.0 / jnp.sqrt(fan_in)
        w = jax.random.uniform(kw, (fan_in, fan_out), jnp.float32, -bound, bound)
        b = jax.random.uniform(kb, (1, fan_out), jnp.float32, -bound, bound)
        params += [w, b]
    return tuple(params)


def reference_forward(x, params):
    (w0, b0, w1, b1, w2, b2, w3, b3, w4, b4) = params
    x1 = x @ w0 + b0
    x2 = jnp.maximum(x1 @ w1 + b1, 0.0)
    x3 = jnp.maximum(x2 @ w2 + b2, 0.0)
    x4 = jnp.maximum(x3 @ w3 + b3, 0.0)
    x5 = x4 @ w4 + b4
    return x5, x4


if __name__ == "__main__":
    key = jax.random.PRNGKey(0)
    key, kx, kh, kx2 = jax.random.split(key, 4)

    params = init_params(key)
    packed = pack_params(params)       # packed ONCE, outside the forward path

    # --- small batch, exact f32 MXU path: strict tolerance -------------------
    batch = 8
    x = jax.random.normal(kx, (batch, 130), jnp.float32)
    hc = jax.random.normal(kh, (batch, 64), jnp.float32)   # unused (as in torch)

    x5, x4 = rnn_arch_2_final(x, packed, hc, mxu="f32")
    jax.block_until_ready((x5, x4))

    x5_ref, x4_ref = reference_forward(x, params)
    assert x5.shape == (batch, 8) and x4.shape == (batch, 64)
    assert jnp.allclose(x5, x5_ref, atol=1e-5, rtol=1e-5)
    assert jnp.allclose(x4, x4_ref, atol=1e-5, rtol=1e-5)

    # --- larger ragged batch, default bf16 MXU operands: relaxed tolerance ---
    batch2 = 600                        # exercises multi-tile grid + row padding
    x_big = jax.random.normal(kx2, (batch2, 130), jnp.float32)
    x5b, x4b = rnn_arch_2_final(x_big, packed)
    jax.block_until_ready((x5b, x4b))

    x5b_ref, x4b_ref = reference_forward(x_big, params)
    assert x5b.shape == (batch2, 8) and x4b.shape == (batch2, 64)
    assert jnp.allclose(x4b, x4b_ref, atol=5e-2, rtol=5e-2)
    assert jnp.allclose(x5b, x5b_ref, atol=5e-2, rtol=5e-2)

    print("KERNEL_OK")
</pallas_src>

<mosaic_0001>
module attributes {stable_mosaic.version = 11 : i64} {
  func.func @mlp_kernel(%arg0: i32, %arg1: memref<8x130xf32, #tpu.memory_space<vmem>>, %arg2: memref<400x64xf32, #tpu.memory_space<vmem>>, %arg3: memref<8x8xf32, #tpu.memory_space<vmem>>, %arg4: memref<8x64xf32, #tpu.memory_space<vmem>>) attributes {dimension_semantics = [#tpu.dimension_semantics<parallel>], iteration_bounds = array<i64: 1>, scalar_prefetch = 0 : i64, scratch_operands = 0 : i64, tpu.core_type = #tpu.core_type<tc>, window_params = [{transform_indices = @transform_0, window_bounds = array<i64: 8, 130>}, {pipeline_mode = #tpu.pipeline_mode<synchronous>, transform_indices = @transform_1, window_bounds = array<i64: 400, 64>}, {transform_indices = @transform_2, window_bounds = array<i64: 8, 8>}, {transform_indices = @transform_3, window_bounds = array<i64: 8, 64>}]} {
    %c0 = arith.constant 0 : index
    %c0_0 = arith.constant 0 : index
    %0 = vector.load %arg1[%c0, %c0_0] : memref<8x130xf32, #tpu.memory_space<vmem>>, vector<8x130xf32>
    %c0_1 = arith.constant 0 : index
    %c0_2 = arith.constant 0 : index
    %1 = vector.load %arg2[%c0_1, %c0_2] : memref<400x64xf32, #tpu.memory_space<vmem>>, vector<130x64xf32>
    %c136 = arith.constant 136 : index
    %c0_3 = arith.constant 0 : index
    %2 = vector.load %arg2[%c136, %c0_3] : memref<400x64xf32, #tpu.memory_space<vmem>>, vector<64x64xf32>
    %c200 = arith.constant 200 : index
    %c0_4 = arith.constant 0 : index
    %3 = vector.load %arg2[%c200, %c0_4] : memref<400x64xf32, #tpu.memory_space<vmem>>, vector<64x64xf32>
    %c264 = arith.constant 264 : index
    %c0_5 = arith.constant 0 : index
    %4 = vector.load %arg2[%c264, %c0_5] : memref<400x64xf32, #tpu.memory_space<vmem>>, vector<64x64xf32>
    %c328 = arith.constant 328 : index
    %c0_6 = arith.constant 0 : index
    %5 = vector.load %arg2[%c328, %c0_6] : memref<400x64xf32, #tpu.memory_space<vmem>>, vector<64x64xf32>
    %c392 = arith.constant 392 : index
    %c0_7 = arith.constant 0 : index
    %6 = vector.load %arg2[%c392, %c0_7] : memref<400x64xf32, #tpu.memory_space<vmem>>, vector<8x64xf32>
    %7 = vector.extract_strided_slice %6 {offsets = [0, 0], sizes = [1, 64], strides = [1, 1]} : vector<8x64xf32> to vector<1x64xf32>
    %8 = vector.extract_strided_slice %6 {offsets = [1, 0], sizes = [1, 64], strides = [1, 1]} : vector<8x64xf32> to vector<1x64xf32>
    %9 = vector.extract_strided_slice %6 {offsets = [2, 0], sizes = [1, 64], strides = [1, 1]} : vector<8x64xf32> to vector<1x64xf32>
    %10 = vector.extract_strided_slice %6 {offsets = [3, 0], sizes = [1, 64], strides = [1, 1]} : vector<8x64xf32> to vector<1x64xf32>
    %11 = vector.extract_strided_slice %6 {offsets = [4, 0], sizes = [1, 64], strides = [1, 1]} : vector<8x64xf32> to vector<1x64xf32>
    %cst = arith.constant dense<0.000000e+00> : vector<8x64xf32>
    %12 = tpu.matmul %0, %1, %cst {dimension_numbers = #tpu.dot_dimension_numbers<[1], [0], [0], [1], [0, 0, 1, 1], [], []>} : vector<8x130xf32>, vector<130x64xf32>, vector<8x64xf32> -> vector<8x64xf32>
    %13 = vector.broadcast %7 : vector<1x64xf32> to vector<8x64xf32>
    %14 = arith.addf %12, %13 : vector<8x64xf32>
    %cst_8 = arith.constant dense<0.000000e+00> : vector<8x64xf32>
    %15 = tpu.matmul %14, %2, %cst_8 {dimension_numbers = #tpu.dot_dimension_numbers<[1], [0], [0], [1], [0, 0, 1, 1], [], []>} : vector<8x64xf32>, vector<64x64xf32>, vector<8x64xf32> -> vector<8x64xf32>
    %16 = vector.broadcast %8 : vector<1x64xf32> to vector<8x64xf32>
    %17 = arith.addf %15, %16 : vector<8x64xf32>
    %cst_9 = arith.constant 0.000000e+00 : f32
    %18 = vector.broadcast %cst_9 : f32 to vector<8x64xf32>
    %19 = arith.maximumf %17, %18 : vector<8x64xf32>
    %cst_10 = arith.constant dense<0.000000e+00> : vector<8x64xf32>
    %20 = tpu.matmul %19, %3, %cst_10 {dimension_numbers = #tpu.dot_dimension_numbers<[1], [0], [0], [1], [0, 0, 1, 1], [], []>} : vector<8x64xf32>, vector<64x64xf32>, vector<8x64xf32> -> vector<8x64xf32>
    %21 = vector.broadcast %9 : vector<1x64xf32> to vector<8x64xf32>
    %22 = arith.addf %20, %21 : vector<8x64xf32>
    %cst_11 = arith.constant 0.000000e+00 : f32
    %23 = vector.broadcast %cst_11 : f32 to vector<8x64xf32>
    %24 = arith.maximumf %22, %23 : vector<8x64xf32>
    %cst_12 = arith.constant dense<0.000000e+00> : vector<8x64xf32>
    %25 = tpu.matmul %24, %4, %cst_12 {dimension_numbers = #tpu.dot_dimension_numbers<[1], [0], [0], [1], [0, 0, 1, 1], [], []>} : vector<8x64xf32>, vector<64x64xf32>, vector<8x64xf32> -> vector<8x64xf32>
    %26 = vector.broadcast %10 : vector<1x64xf32> to vector<8x64xf32>
    %27 = arith.addf %25, %26 : vector<8x64xf32>
    %cst_13 = arith.constant 0.000000e+00 : f32
    %28 = vector.broadcast %cst_13 : f32 to vector<8x64xf32>
    %29 = arith.maximumf %27, %28 : vector<8x64xf32>
    %cst_14 = arith.constant dense<0.000000e+00> : vector<8x64xf32>
    %30 = tpu.matmul %29, %5, %cst_14 {dimension_numbers = #tpu.dot_dimension_numbers<[1], [0], [0], [1], [0, 0, 1, 1], [], []>} : vector<8x64xf32>, vector<64x64xf32>, vector<8x64xf32> -> vector<8x64xf32>
    %31 = vector.broadcast %11 : vector<1x64xf32> to vector<8x64xf32>
    %32 = arith.addf %30, %31 : vector<8x64xf32>
    %c0_15 = arith.constant 0 : index
    %c0_16 = arith.constant 0 : index
    %33 = vector.load %arg4[%c0_15, %c0_16] : memref<8x64xf32, #tpu.memory_space<vmem>>, vector<8x64xf32>
    tpu.vector_store %arg4[%c0_15, %c0_16], %29 {strides = array<i32>} : memref<8x64xf32, #tpu.memory_space<vmem>>, vector<8x64xf32>,
    %34 = vector.extract_strided_slice %32 {offsets = [0, 0], sizes = [8, 8], strides = [1, 1]} : vector<8x64xf32> to vector<8x8xf32>
    %c0_17 = arith.constant 0 : index
    %c0_18 = arith.constant 0 : index
    %35 = vector.load %arg3[%c0_17, %c0_18] : memref<8x8xf32, #tpu.memory_space<vmem>>, vector<8x8xf32>
    tpu.vector_store %arg3[%c0_17, %c0_18], %34 {strides = array<i32>} : memref<8x8xf32, #tpu.memory_space<vmem>>, vector<8x8xf32>,
    return
  }
  func.func @transform_0(%arg0: i32) -> (i32, i32) {
    %c0_i32 = arith.constant 0 : i32
    %c0_i32_0 = arith.constant 0 : i32
    return %arg0, %c0_i32 : i32, i32
  }
  func.func @transform_1(%arg0: i32) -> (i32, i32) {
    %c0_i32 = arith.constant 0 : i32
    %c0_i32_0 = arith.constant 0 : i32
    %c0_i32_1 = arith.constant 0 : i32
    return %c0_i32, %c0_i32_0 : i32, i32
  }
  func.func @transform_2(%arg0: i32) -> (i32, i32) {
    %c0_i32 = arith.constant 0 : i32
    %c0_i32_0 = arith.constant 0 : i32
    return %arg0, %c0_i32 : i32, i32
  }
  func.func @transform_3(%arg0: i32) -> (i32, i32) {
    %c0_i32 = arith.constant 0 : i32
    %c0_i32_0 = arith.constant 0 : i32
    return %arg0, %c0_i32 : i32, i32
  }
}

</mosaic_0001>

<llo_original>
// kernel: rnn_arch_2_final.1
$region0: #{rnn_arch_2_final.1}
  #allocation0 [shape = 'u32[]', space=smem, size = 0x4, offset = 0x4, fixed_abs, tag = 'smem constant byte address 0x4 - core index']
  #allocation1 [shape = 'u32[144,128]{1,0:T(1,128)}', space=vmem, size = 0x12000, scoped, tag = 'internal scratch']
  %s0 = inlined_call_operand.vmem [shape: f32[8,130], index: 0, kind: input, shape index: {}]
  %s1 = inlined_call_operand.vmem [shape: f32[400,64], index: 1, kind: input, shape index: {}]
  %s2 = inlined_call_operand.hbm [shape: f32[8,8], index: 2, kind: output, shape index: {0}]
  %s3 = inlined_call_operand.hbm [shape: f32[8,64], index: 3, kind: output, shape index: {1}]
  %4 = xla_tuple %s2, %s3
  %s5 = sld [smem:[#allocation0]]
  $region26: #{rnn_arch_2_final.1} parent=0
    _
  %s7 = ssub.s32 1, %s5
  %s8 = scalar_select 0, %s7, %s5
  $region1: #{rnn_arch_2_final.1} parent=0
    #allocation2 [shape = 'u8[4096]{0}', space=vmem, size = 0x1000, scoped, tag = 'output window, operand 0, single buffered']
    #allocation3 [shape = 's32[1]{0}', space=sflag, size = 0x4, scoped, tag = 'scoped memory for rnn_arch_2_final.1']
    #allocation4 [shape = 'u8[4096]{0}', space=vmem, size = 0x1000, scoped, tag = 'output window, operand 1, single buffered']
    #allocation5 [shape = 's32[1]{0}', space=sflag, size = 0x4, scoped, tag = 'scoped memory for rnn_arch_2_final.1']
    %9 = vsyncpa [#allocation3], 0
    %10 = vsyncpa [#allocation5], 0
    // Predicated region
    $region2: #{rnn_arch_2_final.1} parent=1 // pred_check
      _
    $region3: #{rnn_arch_2_final.1} parent=1 // pred_check_branch
      %12 = sbr.rel (0) target = $region5
    $region4: #{rnn_arch_2_final.1} parent=1 // pred_region
      _
    $region5: #{rnn_arch_2_final.1} parent=1 // pred_fallthru
      _
    // Predicated region
    $region6: #{rnn_arch_2_final.1} parent=1 // pred_check
      _
    $region7: #{rnn_arch_2_final.1} parent=1 // pred_check_branch
      %14 = sbr.rel (0) target = $region9
    $region8: #{rnn_arch_2_final.1} parent=1 // pred_region
      _
    $region9: #{rnn_arch_2_final.1} parent=1 // pred_fallthru
      _
    %v15 = vld [vmem:[%s0] sm:$0xff]
    %v16 = vld [vmem:[%s0 + $0x8] sm:$0xff]
    %v17 = vld [vmem:[%s1] sm:$0xff]
    %v18 = vld [vmem:[%s1 + $0x8] sm:$0xff]
    %v19 = vld [vmem:[%s1 + $0x10] sm:$0xff]
    %v20 = vld [vmem:[%s1 + $0x18] sm:$0xff]
    %v21 = vld [vmem:[%s1 + $0x20] sm:$0xff]
    %v22 = vld [vmem:[%s1 + $0x28] sm:$0xff]
    %v23 = vld [vmem:[%s1 + $0x30] sm:$0xff]
    %v24 = vld [vmem:[%s1 + $0x38] sm:$0xff]
    %v25 = vld [vmem:[%s1 + $0x40] sm:$0xff]
    %v26 = vld [vmem:[%s1 + $0x48] sm:$0xff]
    %v27 = vld [vmem:[%s1 + $0x50] sm:$0xff]
    %v28 = vld [vmem:[%s1 + $0x58] sm:$0xff]
    %v29 = vld [vmem:[%s1 + $0x60] sm:$0xff]
    %v30 = vld [vmem:[%s1 + $0x68] sm:$0xff]
    %v31 = vld [vmem:[%s1 + $0x70] sm:$0xff]
    %v32 = vld [vmem:[%s1 + $0x78] sm:$0xff]
    %v33 = vld [vmem:[%s1 + $0x80] sm:$0x3]
    %v34 = vld [vmem:[%s1 + $0x88] sm:$0xff]
    %v35 = vld [vmem:[%s1 + $0x90] sm:$0xff]
    %v36 = vld [vmem:[%s1 + $0x98] sm:$0xff]
    %v37 = vld [vmem:[%s1 + $0xa0] sm:$0xff]
    %v38 = vld [vmem:[%s1 + $0xa8] sm:$0xff]
    %v39 = vld [vmem:[%s1 + $0xb0] sm:$0xff]
    %v40 = vld [vmem:[%s1 + $0xb8] sm:$0xff]
    %v41 = vld [vmem:[%s1 + $0xc0] sm:$0xff]
    %v42 = vld [vmem:[%s1 + $0xc8] sm:$0xff]
    %v43 = vld [vmem:[%s1 + $0xd0] sm:$0xff]
    %v44 = vld [vmem:[%s1 + $0xd8] sm:$0xff]
    %v45 = vld [vmem:[%s1 + $0xe0] sm:$0xff]
    %v46 = vld [vmem:[%s1 + $0xe8] sm:$0xff]
    %v47 = vld [vmem:[%s1 + $0xf0] sm:$0xff]
    %v48 = vld [vmem:[%s1 + $0xf8] sm:$0xff]
    %v49 = vld [vmem:[%s1 + $0x100] sm:$0xff]
    %v50 = vld [vmem:[%s1 + $0x108] sm:$0xff]
    %v51 = vld [vmem:[%s1 + $0x110] sm:$0xff]
    %v52 = vld [vmem:[%s1 + $0x118] sm:$0xff]
    %v53 = vld [vmem:[%s1 + $0x120] sm:$0xff]
    %v54 = vld [vmem:[%s1 + $0x128] sm:$0xff]
    %v55 = vld [vmem:[%s1 + $0x130] sm:$0xff]
    %v56 = vld [vmem:[%s1 + $0x138] sm:$0xff]
    %v57 = vld [vmem:[%s1 + $0x140] sm:$0xff]
    %v58 = vld [vmem:[%s1 + $0x148] sm:$0xff]
    %v59 = vld [vmem:[%s1 + $0x150] sm:$0xff]
    %v60 = vld [vmem:[%s1 + $0x158] sm:$0xff]
    %v61 = vld [vmem:[%s1 + $0x160] sm:$0xff]
    %v62 = vld [vmem:[%s1 + $0x168] sm:$0xff]
    %v63 = vld [vmem:[%s1 + $0x170] sm:$0xff]
    %v64 = vld [vmem:[%s1 + $0x178] sm:$0xff]
    %v65 = vld [vmem:[%s1 + $0x180] sm:$0xff]
    %v66 = vld [vmem:[%s1 + $0x188] sm:$0xff]
    %v67 = vlaneseq
    %v68 = vshrl.u32 %v67, 7
    %v69 = vsub.s32 0, %v68
    %v70 = vrot.slane %v66, %v69
    %vm71 = vcmask 15360
    %v73 = vsel %vm71, %v16, 0
    %vm75 = vcmask 1041408
    %v77 = vsel %vm75, %v33, 0
    %79 = vmatprep.subr.mxu0 0.0
    %80 = vmatpush1.msra.mxu0 %v17
    %81 = vmatprep.subr.mxu0 0.0
    %82 = vmatpush1.msra.mxu0 %v18
    %83 = vmatprep.subr.mxu0 0.0
    %84 = vmatpush1.msra.mxu0 %v19
    %85 = vmatprep.subr.mxu0 0.0
    %86 = vmatpush1.msra.mxu0 %v20
    %87 = vmatprep.subr.mxu0 0.0
    %88 = vmatpush1.msra.mxu0 %v21
    %89 = vmatprep.subr.mxu0 0.0
    %90 = vmatpush1.msra.mxu0 %v22
    %91 = vmatprep.subr.mxu0 0.0
    %92 = vmatpush1.msra.mxu0 %v23
    %93 = vmatprep.subr.mxu0 0.0
    %94 = vmatpush1.msra.mxu0 %v24
    %95 = vmatprep.subr.mxu0 0.0
    %96 = vmatpush1.msra.mxu0 %v25
    %97 = vmatprep.subr.mxu0 0.0
    %98 = vmatpush1.msra.mxu0 %v26
    %99 = vmatprep.subr.mxu0 0.0
    %100 = vmatpush1.msra.mxu0 %v27
    %101 = vmatprep.subr.mxu0 0.0
    %102 = vmatpush1.msra.mxu0 %v28
    %103 = vmatprep.subr.mxu0 0.0
    %104 = vmatpush1.msra.mxu0 %v29
    %105 = vmatprep.subr.mxu0 0.0
    %106 = vmatpush1.msra.mxu0 %v30
    %107 = vmatprep.subr.mxu0 0.0
    %108 = vmatpush1.msra.mxu0 %v31
    %109 = vmatprep.subr.mxu0 0.0
    %110 = vmatpush1.msra.mxu0 %v32
    %111 = vmatprep.subr.mxu0 0.0
    %112 = vmatpush1.msra.mxu0 %v77
    %113 = vmatprep.subr.mxu0 0.0
    %114 = vmatpush1.msra.mxu0 0.0
    %115 = vmatprep.subr.mxu0 0.0
    %116 = vmatpush1.msra.mxu0 0.0
    %117 = vmatprep.subr.mxu0 0.0
    %118 = vmatpush1.msra.mxu0 0.0
    %119 = vmatprep.subr.mxu0 0.0
    %120 = vmatpush1.msra.mxu0 0.0
    %121 = vmatprep.subr.mxu0 0.0
    %122 = vmatpush1.msra.mxu0 0.0
    %123 = vmatprep.subr.mxu0 0.0
    %124 = vmatpush1.msra.mxu0 0.0
    %125 = vmatprep.subr.mxu0 0.0
    %126 = vmatpush1.msra.mxu0 0.0
    %127 = vmatprep.subr.mxu0 0.0
    %128 = vmatpush1.msra.mxu0 0.0
    %129 = vmatprep.subr.mxu0 0.0
    %130 = vmatpush1.msra.mxu0 0.0
    %131 = vmatprep.subr.mxu0 0.0
    %132 = vmatpush1.msra.mxu0 0.0
    %133 = vmatprep.subr.mxu0 0.0
    %134 = vmatpush1.msra.mxu0 0.0
    %135 = vmatprep.subr.mxu0 0.0
    %136 = vmatpush1.msra.mxu0 0.0
    %137 = vmatprep.subr.mxu0 0.0
    %138 = vmatpush1.msra.mxu0 0.0
    %139 = vmatprep.subr.mxu0 0.0
    %140 = vmatpush1.msra.mxu0 0.0
    %141 = vmatprep.subr.mxu0 0.0
    %142 = vmatpush1.msra.mxu0 0.0
    %143 = vmatprep.mubr.f32.mxu0 %v73
    %144 = vmatmul.mubr.f32.gmra.mrb[0].mxu0 %v15
    %v145 = vpop.f32.mrb[0].mxu0
    %v146 = vadd.f32 %v70, %v145
    %v147 = vpop.f32.mrb[0].mxu0
    %148 = vdwg.mxu0
    %v149 = vlaneseq
    %v150 = vshrl.u32 %v149, 7
    %v151 = vsub.s32 1, %v150
    %v152 = vrot.slane %v66, %v151
    %vm153 = vcmask 523264
    %v155 = vsel %vm153, %v146, 0
    %157 = vmatprep.subr.mxu0 0.0
    %158 = vmatpush1.msra.mxu0 %v34
    %159 = vmatprep.subr.mxu0 0.0
    %160 = vmatpush1.msra.mxu0 %v35
    %161 = vmatprep.subr.mxu0 0.0
    %162 = vmatpush1.msra.mxu0 %v36
    %163 = vmatprep.subr.mxu0 0.0
    %164 = vmatpush1.msra.mxu0 %v37
    %165 = vmatprep.subr.mxu0 0.0
    %166 = vmatpush1.msra.mxu0 %v38
    %167 = vmatprep.subr.mxu0 0.0
    %168 = vmatpush1.msra.mxu0 %v39
    %169 = vmatprep.subr.mxu0 0.0
    %170 = vmatpush1.msra.mxu0 %v40
    %171 = vmatprep.subr.mxu0 0.0
    %172 = vmatpush1.msra.mxu0 %v41
    %173 = vmatprep.subr.mxu0 0.0
    %174 = vmatpush1.msra.mxu0 0.0
    %175 = vmatprep.subr.mxu0 0.0
    %176 = vmatpush1.msra.mxu0 0.0
    %177 = vmatprep.subr.mxu0 0.0
    %178 = vmatpush1.msra.mxu0 0.0
    %179 = vmatprep.subr.mxu0 0.0
    %180 = vmatpush1.msra.mxu0 0.0
    %181 = vmatprep.subr.mxu0 0.0
    %182 = vmatpush1.msra.mxu0 0.0
    %183 = vmatprep.subr.mxu0 0.0
    %184 = vmatpush1.msra.mxu0 0.0
    %185 = vmatprep.subr.mxu0 0.0
    %186 = vmatpush1.msra.mxu0 0.0
    %187 = vmatprep.subr.mxu0 0.0
    %188 = vmatpush1.msra.mxu0 0.0
    %189 = vmatprep.subr.mxu0 0.0
    %190 = vmatpush1.msra.mxu0 0.0
    %191 = vmatprep.subr.mxu0 0.0
    %192 = vmatpush1.msra.mxu0 0.0
    %193 = vmatprep.subr.mxu0 0.0
    %194 = vmatpush1.msra.mxu0 0.0
    %195 = vmatprep.subr.mxu0 0.0
    %196 = vmatpush1.msra.mxu0 0.0
    %197 = vmatprep.subr.mxu0 0.0
    %198 = vmatpush1.msra.mxu0 0.0
    %199 = vmatprep.subr.mxu0 0.0
    %200 = vmatpush1.msra.mxu0 0.0
    %201 = vmatprep.subr.mxu0 0.0
    %202 = vmatpush1.msra.mxu0 0.0
    %203 = vmatprep.subr.mxu0 0.0
    %204 = vmatpush1.msra.mxu0 0.0
    %205 = vmatprep.subr.mxu0 0.0
    %206 = vmatpush1.msra.mxu0 0.0
    %207 = vmatprep.subr.mxu0 0.0
    %208 = vmatpush1.msra.mxu0 0.0
    %209 = vmatprep.subr.mxu0 0.0
    %210 = vmatpush1.msra.mxu0 0.0
    %211 = vmatprep.subr.mxu0 0.0
    %212 = vmatpush1.msra.mxu0 0.0
    %213 = vmatprep.subr.mxu0 0.0
    %214 = vmatpush1.msra.mxu0 0.0
    %215 = vmatprep.subr.mxu0 0.0
    %216 = vmatpush1.msra.mxu0 0.0
    %217 = vmatprep.subr.mxu0 0.0
    %218 = vmatpush1.msra.mxu0 0.0
    %219 = vmatprep.subr.mxu0 0.0
    %220 = vmatpush1.msra.mxu0 0.0
    %221 = vmatprep.mubr.f32.mxu0 0.0
    %222 = vmatmul.mubr.f32.gmra.mrb[0].mxu0 %v155
    %v223 = vpop.f32.mrb[0].mxu0
    %v224 = vadd.f32 %v152, %v223
    %v225 = vpop.f32.mrb[0].mxu0
    %226 = vdwg.mxu0
    %v227 = vmax.f32 %v224, 0.0
    %v228 = vlaneseq
    %v229 = vshrl.u32 %v228, 7
    %v230 = vsub.s32 2, %v229
    %v231 = vrot.slane %v66, %v230
    %v233 = vsel %vm153, %v227, 0
    %235 = vmatprep.subr.mxu0 0.0
    %236 = vmatpush1.msra.mxu0 %v42
    %237 = vmatprep.subr.mxu0 0.0
    %238 = vmatpush1.msra.mxu0 %v43
    %239 = vmatprep.subr.mxu0 0.0
    %240 = vmatpush1.msra.mxu0 %v44
    %241 = vmatprep.subr.mxu0 0.0
    %242 = vmatpush1.msra.mxu0 %v45
    %243 = vmatprep.subr.mxu0 0.0
    %244 = vmatpush1.msra.mxu0 %v46
    %245 = vmatprep.subr.mxu0 0.0
    %246 = vmatpush1.msra.mxu0 %v47
    %247 = vmatprep.subr.mxu0 0.0
    %248 = vmatpush1.msra.mxu0 %v48
    %249 = vmatprep.subr.mxu0 0.0
    %250 = vmatpush1.msra.mxu0 %v49
    %251 = vmatprep.subr.mxu0 0.0
    %252 = vmatpush1.msra.mxu0 0.0
    %253 = vmatprep.subr.mxu0 0.0
    %254 = vmatpush1.msra.mxu0 0.0
    %255 = vmatprep.subr.mxu0 0.0
    %256 = vmatpush1.msra.mxu0 0.0
    %257 = vmatprep.subr.mxu0 0.0
    %258 = vmatpush1.msra.mxu0 0.0
    %259 = vmatprep.subr.mxu0 0.0
    %260 = vmatpush1.msra.mxu0 0.0
    %261 = vmatprep.subr.mxu0 0.0
    %262 = vmatpush1.msra.mxu0 0.0
    %263 = vmatprep.subr.mxu0 0.0
    %264 = vmatpush1.msra.mxu0 0.0
    %265 = vmatprep.subr.mxu0 0.0
    %266 = vmatpush1.msra.mxu0 0.0
    %267 = vmatprep.subr.mxu0 0.0
    %268 = vmatpush1.msra.mxu0 0.0
    %269 = vmatprep.subr.mxu0 0.0
    %270 = vmatpush1.msra.mxu0 0.0
    %271 = vmatprep.subr.mxu0 0.0
    %272 = vmatpush1.msra.mxu0 0.0
    %273 = vmatprep.subr.mxu0 0.0
    %274 = vmatpush1.msra.mxu0 0.0
    %275 = vmatprep.subr.mxu0 0.0
    %276 = vmatpush1.msra.mxu0 0.0
    %277 = vmatprep.subr.mxu0 0.0
    %278 = vmatpush1.msra.mxu0 0.0
    %279 = vmatprep.subr.mxu0 0.0
    %280 = vmatpush1.msra.mxu0 0.0
    %281 = vmatprep.subr.mxu0 0.0
    %282 = vmatpush1.msra.mxu0 0.0
    %283 = vmatprep.subr.mxu0 0.0
    %284 = vmatpush1.msra.mxu0 0.0
    %285 = vmatprep.subr.mxu0 0.0
    %286 = vmatpush1.msra.mxu0 0.0
    %287 = vmatprep.subr.mxu0 0.0
    %288 = vmatpush1.msra.mxu0 0.0
    %289 = vmatprep.subr.mxu0 0.0
    %290 = vmatpush1.msra.mxu0 0.0
    %291 = vmatprep.subr.mxu0 0.0
    %292 = vmatpush1.msra.mxu0 0.0
    %293 = vmatprep.subr.mxu0 0.0
    %294 = vmatpush1.msra.mxu0 0.0
    %295 = vmatprep.subr.mxu0 0.0
    %296 = vmatpush1.msra.mxu0 0.0
    %297 = vmatprep.subr.mxu0 0.0
    %298 = vmatpush1.msra.mxu0 0.0
    %299 = vmatprep.mubr.f32.mxu0 0.0
    %300 = vmatmul.mubr.f32.gmra.mrb[0].mxu0 %v233
    %v301 = vpop.f32.mrb[0].mxu0
    %v302 = vadd.f32 %v231, %v301
    %v303 = vpop.f32.mrb[0].mxu0
    %304 = vdwg.mxu0
    %v305 = vmax.f32 %v302, 0.0
    %v306 = vlaneseq
    %v307 = vshrl.u32 %v306, 7
    %v308 = vsub.s32 3, %v307
    %v309 = vrot.slane %v66, %v308
    %v311 = vsel %vm153, %v305, 0
    %313 = vmatprep.subr.mxu0 0.0
    %314 = vmatpush1.msra.mxu0 %v50
    %315 = vmatprep.subr.mxu0 0.0
    %316 = vmatpush1.msra.mxu0 %v51
    %317 = vmatprep.subr.mxu0 0.0
    %318 = vmatpush1.msra.mxu0 %v52
    %319 = vmatprep.subr.mxu0 0.0
    %320 = vmatpush1.msra.mxu0 %v53
    %321 = vmatprep.subr.mxu0 0.0
    %322 = vmatpush1.msra.mxu0 %v54
    %323 = vmatprep.subr.mxu0 0.0
    %324 = vmatpush1.msra.mxu0 %v55
    %325 = vmatprep.subr.mxu0 0.0
    %326 = vmatpush1.msra.mxu0 %v56
    %327 = vmatprep.subr.mxu0 0.0
    %328 = vmatpush1.msra.mxu0 %v57
    %329 = vmatprep.subr.mxu0 0.0
    %330 = vmatpush1.msra.mxu0 0.0
    %331 = vmatprep.subr.mxu0 0.0
    %332 = vmatpush1.msra.mxu0 0.0
    %333 = vmatprep.subr.mxu0 0.0
    %334 = vmatpush1.msra.mxu0 0.0
    %335 = vmatprep.subr.mxu0 0.0
    %336 = vmatpush1.msra.mxu0 0.0
    %337 = vmatprep.subr.mxu0 0.0
    %338 = vmatpush1.msra.mxu0 0.0
    %339 = vmatprep.subr.mxu0 0.0
    %340 = vmatpush1.msra.mxu0 0.0
    %341 = vmatprep.subr.mxu0 0.0
    %342 = vmatpush1.msra.mxu0 0.0
    %343 = vmatprep.subr.mxu0 0.0
    %344 = vmatpush1.msra.mxu0 0.0
    %345 = vmatprep.subr.mxu0 0.0
    %346 = vmatpush1.msra.mxu0 0.0
    %347 = vmatprep.subr.mxu0 0.0
    %348 = vmatpush1.msra.mxu0 0.0
    %349 = vmatprep.subr.mxu0 0.0
    %350 = vmatpush1.msra.mxu0 0.0
    %351 = vmatprep.subr.mxu0 0.0
    %352 = vmatpush1.msra.mxu0 0.0
    %353 = vmatprep.subr.mxu0 0.0
    %354 = vmatpush1.msra.mxu0 0.0
    %355 = vmatprep.subr.mxu0 0.0
    %356 = vmatpush1.msra.mxu0 0.0
    %357 = vmatprep.subr.mxu0 0.0
    %358 = vmatpush1.msra.mxu0 0.0
    %359 = vmatprep.subr.mxu0 0.0
    %360 = vmatpush1.msra.mxu0 0.0
    %361 = vmatprep.subr.mxu0 0.0
    %362 = vmatpush1.msra.mxu0 0.0
    %363 = vmatprep.subr.mxu0 0.0
    %364 = vmatpush1.msra.mxu0 0.0
    %365 = vmatprep.subr.mxu0 0.0
    %366 = vmatpush1.msra.mxu0 0.0
    %367 = vmatprep.subr.mxu0 0.0
    %368 = vmatpush1.msra.mxu0 0.0
    %369 = vmatprep.subr.mxu0 0.0
    %370 = vmatpush1.msra.mxu0 0.0
    %371 = vmatprep.subr.mxu0 0.0
    %372 = vmatpush1.msra.mxu0 0.0
    %373 = vmatprep.subr.mxu0 0.0
    %374 = vmatpush1.msra.mxu0 0.0
    %375 = vmatprep.subr.mxu0 0.0
    %376 = vmatpush1.msra.mxu0 0.0
    %377 = vmatprep.mubr.f32.mxu0 0.0
    %378 = vmatmul.mubr.f32.gmra.mrb[0].mxu0 %v311
    %v379 = vpop.f32.mrb[0].mxu0
    %v380 = vadd.f32 %v309, %v379
    %v381 = vpop.f32.mrb[0].mxu0
    %382 = vdwg.mxu0
    %v383 = vmax.f32 %v380, 0.0
    %v384 = vlaneseq
    %v385 = vshrl.u32 %v384, 7
    %v386 = vsub.s32 4, %v385
    %v387 = vrot.slane %v66, %v386
    %v389 = vsel %vm153, %v383, 0
    %391 = vmatprep.subr.mxu0 0.0
    %392 = vmatpush1.msra.mxu0 %v58
    %393 = vmatprep.subr.mxu0 0.0
    %394 = vmatpush1.msra.mxu0 %v59
    %395 = vmatprep.subr.mxu0 0.0
    %396 = vmatpush1.msra.mxu0 %v60
    %397 = vmatprep.subr.mxu0 0.0
    %398 = vmatpush1.msra.mxu0 %v61
    %399 = vmatprep.subr.mxu0 0.0
    %400 = vmatpush1.msra.mxu0 %v62
    %401 = vmatprep.subr.mxu0 0.0
    %402 = vmatpush1.msra.mxu0 %v63
    %403 = vmatprep.subr.mxu0 0.0
    %404 = vmatpush1.msra.mxu0 %v64
    %405 = vmatprep.subr.mxu0 0.0
    %406 = vmatpush1.msra.mxu0 %v65
    %407 = vmatprep.subr.mxu0 0.0
    %408 = vmatpush1.msra.mxu0 0.0
    %409 = vmatprep.subr.mxu0 0.0
    %410 = vmatpush1.msra.mxu0 0.0
    %411 = vmatprep.subr.mxu0 0.0
    %412 = vmatpush1.msra.mxu0 0.0
    %413 = vmatprep.subr.mxu0 0.0
    %414 = vmatpush1.msra.mxu0 0.0
    %415 = vmatprep.subr.mxu0 0.0
    %416 = vmatpush1.msra.mxu0 0.0
    %417 = vmatprep.subr.mxu0 0.0
    %418 = vmatpush1.msra.mxu0 0.0
    %419 = vmatprep.subr.mxu0 0.0
    %420 = vmatpush1.msra.mxu0 0.0
    %421 = vmatprep.subr.mxu0 0.0
    %422 = vmatpush1.msra.mxu0 0.0
    %423 = vmatprep.subr.mxu0 0.0
    %424 = vmatpush1.msra.mxu0 0.0
    %425 = vmatprep.subr.mxu0 0.0
    %426 = vmatpush1.msra.mxu0 0.0
    %427 = vmatprep.subr.mxu0 0.0
    %428 = vmatpush1.msra.mxu0 0.0
    %429 = vmatprep.subr.mxu0 0.0
    %430 = vmatpush1.msra.mxu0 0.0
    %431 = vmatprep.subr.mxu0 0.0
    %432 = vmatpush1.msra.mxu0 0.0
    %433 = vmatprep.subr.mxu0 0.0
    %434 = vmatpush1.msra.mxu0 0.0
    %435 = vmatprep.subr.mxu0 0.0
    %436 = vmatpush1.msra.mxu0 0.0
    %437 = vmatprep.subr.mxu0 0.0
    %438 = vmatpush1.msra.mxu0 0.0
    %439 = vmatprep.subr.mxu0 0.0
    %440 = vmatpush1.msra.mxu0 0.0
    %441 = vmatprep.subr.mxu0 0.0
    %442 = vmatpush1.msra.mxu0 0.0
    %443 = vmatprep.subr.mxu0 0.0
    %444 = vmatpush1.msra.mxu0 0.0
    %445 = vmatprep.subr.mxu0 0.0
    %446 = vmatpush1.msra.mxu0 0.0
    %447 = vmatprep.subr.mxu0 0.0
    %448 = vmatpush1.msra.mxu0 0.0
    %449 = vmatprep.subr.mxu0 0.0
    %450 = vmatpush1.msra.mxu0 0.0
    %451 = vmatprep.subr.mxu0 0.0
    %452 = vmatpush1.msra.mxu0 0.0
    %453 = vmatprep.subr.mxu0 0.0
    %454 = vmatpush1.msra.mxu0 0.0
    %455 = vmatprep.mubr.f32.mxu0 0.0
    %456 = vmatmul.mubr.f32.gmra.mrb[0].mxu0 %v389
    %v457 = vpop.f32.mrb[0].mxu0
    %v458 = vadd.f32 %v387, %v457
    %v459 = vpop.f32.mrb[0].mxu0
    %460 = vdwg.mxu0
    %461 = vst.msk [vmem:[#allocation4] sm:$0xff] %vm153, %v383
    %vm462 = vcmask 64512
    %463 = vst.msk [vmem:[#allocation2] sm:$0xff] %vm462, %v458
    // Predicated region
    $region10: #{rnn_arch_2_final.1} parent=1 // pred_check
      _
    $region11: #{rnn_arch_2_final.1} parent=1 // pred_check_branch
      %465 = sbr.rel (0) target = $region13
    $region12: #{rnn_arch_2_final.1} parent=1 // pred_region
      %s467 = ssub.s32 128, 128
      %468 = vsyncadd [#allocation3], %s467
      %s470 = sshll.u32 [#allocation2], 4
      %s471 = int_to_ptr.vmem [resolvable:$true] %s470
      %473 = dma.vmem_to_hbm [thread:$0]  %s471, 128, %s2, [#allocation3]
    $region13: #{rnn_arch_2_final.1} parent=1 // pred_fallthru
      _
    // Predicated region
    $region14: #{rnn_arch_2_final.1} parent=1 // pred_check
      _
    $region15: #{rnn_arch_2_final.1} parent=1 // pred_check_branch
      %475 = sbr.rel (0) target = $region17
    $region16: #{rnn_arch_2_final.1} parent=1 // pred_region
      %s477 = ssub.s32 128, 128
      %478 = vsyncadd [#allocation5], %s477
      %s480 = sshll.u32 [#allocation4], 4
      %s481 = int_to_ptr.vmem [resolvable:$true] %s480
      %483 = dma.vmem_to_hbm [thread:$0]  %s481, 128, %s3, [#allocation5]
    $region17: #{rnn_arch_2_final.1} parent=1 // pred_fallthru
      _
    // Predicated region
    $region18: #{rnn_arch_2_final.1} parent=1 // pred_check
      _
    $region19: #{rnn_arch_2_final.1} parent=1 // pred_check_branch
      %485 = sbr.rel (0) target = $region21
    $region20: #{rnn_arch_2_final.1} parent=1 // pred_region
      %486 = dma.done [#allocation3], 128
    $region21: #{rnn_arch_2_final.1} parent=1 // pred_fallthru
      _
    // Predicated region
    $region22: #{rnn_arch_2_final.1} parent=1 // pred_check
      _
    $region23: #{rnn_arch_2_final.1} parent=1 // pred_check_branch
      %488 = sbr.rel (0) target = $region25
    $region24: #{rnn_arch_2_final.1} parent=1 // pred_region
      %489 = dma.done [#allocation5], 128
    $region25: #{rnn_arch_2_final.1} parent=1 // pred_fallthru
      _
    %490 = vsyncpa [#allocation3], 1
    %491 = vsyncpa [#allocation5], 1

</llo_original>
